<compile_context>
chip_gen: v7x
topology: tpu7x:2x2x1
jax: 0.10.0
libtpu: 0.0.40
codegen_flags: <defaults>
</compile_context>

<pallas_src>
import jax
import jax.numpy as jnp
from jax.experimental import pallas as pl
from jax.experimental.pallas import tpu as pltpu


def _round_up(n, m):
    return ((n + m - 1) // m) * m


def _choose_tile(B, tm_request):
    """Pick (Bp, tile) for the lane (batch) axis, avoiding padding when possible."""
    LANE = 128
    tm_request = max(LANE, tm_request)
    if B % LANE != 0 and B <= tm_request:
        # Small / ragged batch: one lane-block equal to the full batch extent
        # (block == full array dim is always a legal layout; no pad, grid=1).
        return B, B
    Bp = _round_up(B, LANE)                     # == B when already lane-aligned
    tile = LANE
    for c in range(min(tm_request, Bp) // LANE, 0, -1):
        if Bp % (c * LANE) == 0:                # largest 128-multiple divisor
            tile = c * LANE
            break
    # v7x has 2 TensorCores: make sure a "parallel" grid has >= 2 steps so the
    # batch tiles can actually split across cores (no-op on v5e/v6e).
    if Bp // tile == 1 and (Bp // 2) % LANE == 0:
        tile = Bp // 2
    return Bp, tile


def _mlp_kernel(xT_ref, tT_ref, w1xT_ref, w1tT_ref, b1T_ref,
                w2T_ref, b2T_ref, w3T_ref, b3T_ref, oT_ref):
    D = xT_ref.shape[0]

    tT = tT_ref[...].astype(jnp.float32)                       # (1, tm)

    # ---- Layer 1: Linear(D+1, H) + ReLU -----------------------------------
    # h1T = W1x^T @ xT + w1t^T * tT + b1                        # (H, tm)
    h1 = w1tT_ref[...].astype(jnp.float32) * tT + b1T_ref[...]
    if D <= 8:
        # Tiny K: do the x-contraction as D broadcast-FMAs on the VPU (a K=D
        # MXU pass would be almost pure fill/drain latency at ~1-3% array use).
        xT = xT_ref[...].astype(jnp.float32)                    # (D, tm)
        w1xT = w1xT_ref[...].astype(jnp.float32)                # (H, D)
        for d in range(D):
            h1 = h1 + w1xT[:, d:d + 1] * xT[d:d + 1, :]
    else:
        h1 = h1 + jnp.dot(w1xT_ref[...], xT_ref[...],
                          preferred_element_type=jnp.float32)
    h1 = jnp.maximum(h1, 0.0)

    # ---- Layer 2: Linear(H, H) + ReLU --------------------------------------
    h2 = jnp.dot(w2T_ref[...], h1.astype(w2T_ref.dtype),
                 preferred_element_type=jnp.float32)
    h2 = jnp.maximum(h2 + b2T_ref[...], 0.0)

    # ---- Layer 3: Linear(H, D) ----------------------------------------------
    out = jnp.dot(w3T_ref[...], h2.astype(w3T_ref.dtype),
                  preferred_element_type=jnp.float32) + b3T_ref[...]
    oT_ref[...] = out.astype(oT_ref.dtype)


def fc_network_forward(x, t, params, *, tm=2048, use_bf16=None):
    """Pallas forward of FcNetwork.

    x: (B, D) float32;  t: (B, 1) float32
    params: dict with w1_x (D,H), w1_t (1,H), b1 (1,H), w2 (H,H), b2 (1,H),
            w3 (H,D), b3 (1,D)   (PyTorch orientation: (in_features, out_features))
    returns: (B, D) float32
    """
    B, D = x.shape
    H = params["w1_x"].shape[1]

    if use_bf16 is None:
        # bf16 MXU inputs only pay off at production sizes (HBM-bound streams,
        # full MXU tiles); pointless at D=4 / H=32.
        use_bf16 = (H >= 128 and B >= 1024)
    mxu_dtype = jnp.bfloat16 if use_bf16 else x.dtype

    Bp, tile = _choose_tile(B, tm)

    # Batch-on-lanes layout: transpose activations so batch is the lane dim.
    # (Layout plumbing only; a full DDPM pipeline would keep the (D, B)
    # layout end-to-end and skip these transposes entirely.)
    xT = x.T.astype(mxu_dtype)                      # (D, B)
    tT = t.T.astype(jnp.float32)                    # (1, B)
    if Bp != B:
        # Fallback only for large ragged batches (B > tile and B % 128 != 0);
        # padded lanes compute garbage and are sliced off below.
        xT = jnp.pad(xT, ((0, 0), (0, Bp - B)))
        tT = jnp.pad(tT, ((0, 0), (0, Bp - B)))

    # MXU-side weights transposed; elementwise-side params stay f32.
    w1xT = params["w1_x"].T.astype(mxu_dtype)       # (H, D)
    w1tT = params["w1_t"].T.astype(jnp.float32)     # (H, 1)
    b1T = params["b1"].T.astype(jnp.float32)        # (H, 1)
    w2T = params["w2"].T.astype(mxu_dtype)          # (H, H)
    b2T = params["b2"].T.astype(jnp.float32)        # (H, 1)
    w3T = params["w3"].T.astype(mxu_dtype)          # (D, H)
    b3T = params["b3"].T.astype(jnp.float32)        # (D, 1)

    grid = (Bp // tile,)

    # Activations: tiled along the lane (batch) axis.  Weights/biases: constant
    # block index -> loaded once, VMEM-resident across all grid steps.
    act_spec = lambda rows: pl.BlockSpec((rows, tile), lambda i: (0, i))
    w_spec = lambda shape: pl.BlockSpec(shape, lambda i: (0, 0))

    # Footprint is KBs at these sizes; only raise the scoped-VMEM limit when a
    # very large tile actually needs it (never shrink the tile for v7x).
    est_bytes = (2 * (2 * D + 1) * tile + 2 * H * tile
                 + (D * H + H * H + H * D + 3 * H)) * 4
    vmem_limit = None
    if est_bytes > 24 * 1024 * 1024:
        vmem_limit = min(2 * est_bytes, 60 * 1024 * 1024)

    outT = pl.pallas_call(
        _mlp_kernel,
        out_shape=jax.ShapeDtypeStruct((D, Bp), jnp.float32),
        grid=grid,
        in_specs=[
            act_spec(D),          # xT
            act_spec(1),          # tT
            w_spec((H, D)),       # w1_x^T
            w_spec((H, 1)),       # w1_t^T
            w_spec((H, 1)),       # b1^T
            w_spec((H, H)),       # w2^T
            w_spec((H, 1)),       # b2^T
            w_spec((D, H)),       # w3^T
            w_spec((D, 1)),       # b3^T
        ],
        out_specs=act_spec(D),
        compiler_params=pltpu.CompilerParams(
            dimension_semantics=("parallel",),
            vmem_limit_bytes=vmem_limit),
    )(xT, tT, w1xT, w1tT, b1T, w2T, b2T, w3T, b3T)

    return outT[:, :B].T


def init_params(key, input_dim, num_hidden):
    """Deterministic synthetic init (shapes match the nn.Sequential layers).

    w1 is generated as the PyTorch (input_dim+1, H) matrix then split into the
    x-rows (w1_x) and the time-row (w1_t) so the kernel can skip the concat.
    """
    k1, k2, k3, k4, k5, k6 = jax.random.split(key, 6)

    def lin(kw, kb, fan_in, fan_out):
        bound = 1.0 / jnp.sqrt(fan_in)
        w = jax.random.uniform(kw, (fan_in, fan_out), jnp.float32, -bound, bound)
        b = jax.random.uniform(kb, (1, fan_out), jnp.float32, -bound, bound)
        return w, b

    w1, b1 = lin(k1, k2, input_dim + 1, num_hidden)
    w2, b2 = lin(k3, k4, num_hidden, num_hidden)
    w3, b3 = lin(k5, k6, num_hidden, input_dim)
    return {
        "w1_x": w1[:input_dim],        # (D, H)
        "w1_t": w1[input_dim:],        # (1, H)
        "b1": b1,
        "w2": w2, "b2": b2,
        "w3": w3, "b3": b3,
    }


def _reference(x, t, p):
    # Pure-JAX reference identical to the PyTorch forward (explicit concat).
    w1 = jnp.concatenate([p["w1_x"], p["w1_t"]], axis=0)
    x_t = jnp.concatenate([x, t], axis=1)
    h1 = jnp.maximum(x_t @ w1 + p["b1"], 0.0)
    h2 = jnp.maximum(h1 @ p["w2"] + p["b2"], 0.0)
    return h2 @ p["w3"] + p["b3"]


if __name__ == "__main__":
    input_dim = 4
    num_hidden = 32

    key = jax.random.PRNGKey(0)
    kx, kt, kp, kx2, kt2 = jax.random.split(key, 5)
    params = init_params(kp, input_dim, num_hidden)

    # Case 1: small ragged batch -> single full-extent lane block, no padding.
    B1 = 64
    x1 = jax.random.normal(kx, (B1, input_dim), dtype=jnp.float32)
    t1 = jax.random.uniform(kt, (B1, 1), dtype=jnp.float32)
    out1 = jax.block_until_ready(fc_network_forward(x1, t1, params))
    assert out1.shape == (B1, input_dim)
    assert jnp.allclose(out1, _reference(x1, t1, params), atol=1e-5, rtol=1e-5)

    # Case 2: lane-aligned batch -> tiled grid with >=2 "parallel" steps
    # (exercises the multi-tile / v7x-splitting path).
    B2 = 256
    x2 = jax.random.normal(kx2, (B2, input_dim), dtype=jnp.float32)
    t2 = jax.random.uniform(kt2, (B2, 1), dtype=jnp.float32)
    out2 = jax.block_until_ready(fc_network_forward(x2, t2, params))
    assert out2.shape == (B2, input_dim)
    assert jnp.allclose(out2, _reference(x2, t2, params), atol=1e-5, rtol=1e-5)

    print("KERNEL_OK")
</pallas_src>

<mosaic_0001>
module attributes {stable_mosaic.version = 11 : i64} {
  func.func @_mlp_kernel(%arg0: i32, %arg1: memref<4x64xf32, #tpu.memory_space<vmem>>, %arg2: memref<1x64xf32, #tpu.memory_space<vmem>>, %arg3: memref<32x4xf32, #tpu.memory_space<vmem>>, %arg4: memref<32x1xf32, #tpu.memory_space<vmem>>, %arg5: memref<32x1xf32, #tpu.memory_space<vmem>>, %arg6: memref<32x32xf32, #tpu.memory_space<vmem>>, %arg7: memref<32x1xf32, #tpu.memory_space<vmem>>, %arg8: memref<4x32xf32, #tpu.memory_space<vmem>>, %arg9: memref<4x1xf32, #tpu.memory_space<vmem>>, %arg10: memref<4x64xf32, #tpu.memory_space<vmem>>) attributes {dimension_semantics = [#tpu.dimension_semantics<parallel>], iteration_bounds = array<i64: 1>, scalar_prefetch = 0 : i64, scratch_operands = 0 : i64, tpu.core_type = #tpu.core_type<tc>, window_params = [{transform_indices = @transform_0, window_bounds = array<i64: 4, 64>}, {transform_indices = @transform_1, window_bounds = array<i64: 1, 64>}, {pipeline_mode = #tpu.pipeline_mode<synchronous>, transform_indices = @transform_2, window_bounds = array<i64: 32, 4>}, {pipeline_mode = #tpu.pipeline_mode<synchronous>, transform_indices = @transform_3, window_bounds = array<i64: 32, 1>}, {pipeline_mode = #tpu.pipeline_mode<synchronous>, transform_indices = @transform_4, window_bounds = array<i64: 32, 1>}, {pipeline_mode = #tpu.pipeline_mode<synchronous>, transform_indices = @transform_5, window_bounds = array<i64: 32, 32>}, {pipeline_mode = #tpu.pipeline_mode<synchronous>, transform_indices = @transform_6, window_bounds = array<i64: 32, 1>}, {pipeline_mode = #tpu.pipeline_mode<synchronous>, transform_indices = @transform_7, window_bounds = array<i64: 4, 32>}, {pipeline_mode = #tpu.pipeline_mode<synchronous>, transform_indices = @transform_8, window_bounds = array<i64: 4, 1>}, {transform_indices = @transform_9, window_bounds = array<i64: 4, 64>}]} {
    %c0 = arith.constant 0 : index
    %c0_0 = arith.constant 0 : index
    %0 = vector.load %arg2[%c0, %c0_0] : memref<1x64xf32, #tpu.memory_space<vmem>>, vector<1x64xf32>
    %c0_1 = arith.constant 0 : index
    %c0_2 = arith.constant 0 : index
    %1 = vector.load %arg4[%c0_1, %c0_2] : memref<32x1xf32, #tpu.memory_space<vmem>>, vector<32x1xf32>
    %2 = vector.broadcast %1 : vector<32x1xf32> to vector<32x64xf32>
    %3 = vector.broadcast %0 : vector<1x64xf32> to vector<32x64xf32>
    %4 = arith.mulf %2, %3 : vector<32x64xf32>
    %c0_3 = arith.constant 0 : index
    %c0_4 = arith.constant 0 : index
    %5 = vector.load %arg5[%c0_3, %c0_4] : memref<32x1xf32, #tpu.memory_space<vmem>>, vector<32x1xf32>
    %6 = vector.broadcast %5 : vector<32x1xf32> to vector<32x64xf32>
    %7 = arith.addf %4, %6 : vector<32x64xf32>
    %c0_5 = arith.constant 0 : index
    %c0_6 = arith.constant 0 : index
    %8 = vector.load %arg1[%c0_5, %c0_6] : memref<4x64xf32, #tpu.memory_space<vmem>>, vector<4x64xf32>
    %c0_7 = arith.constant 0 : index
    %c0_8 = arith.constant 0 : index
    %9 = vector.load %arg3[%c0_7, %c0_8] : memref<32x4xf32, #tpu.memory_space<vmem>>, vector<32x4xf32>
    %10 = vector.extract_strided_slice %9 {offsets = [0, 0], sizes = [32, 1], strides = [1, 1]} : vector<32x4xf32> to vector<32x1xf32>
    %11 = vector.extract_strided_slice %8 {offsets = [0, 0], sizes = [1, 64], strides = [1, 1]} : vector<4x64xf32> to vector<1x64xf32>
    %12 = vector.broadcast %10 : vector<32x1xf32> to vector<32x64xf32>
    %13 = vector.broadcast %11 : vector<1x64xf32> to vector<32x64xf32>
    %14 = arith.mulf %12, %13 : vector<32x64xf32>
    %15 = arith.addf %7, %14 : vector<32x64xf32>
    %16 = vector.extract_strided_slice %9 {offsets = [0, 1], sizes = [32, 1], strides = [1, 1]} : vector<32x4xf32> to vector<32x1xf32>
    %17 = vector.extract_strided_slice %8 {offsets = [1, 0], sizes = [1, 64], strides = [1, 1]} : vector<4x64xf32> to vector<1x64xf32>
    %18 = vector.broadcast %16 : vector<32x1xf32> to vector<32x64xf32>
    %19 = vector.broadcast %17 : vector<1x64xf32> to vector<32x64xf32>
    %20 = arith.mulf %18, %19 : vector<32x64xf32>
    %21 = arith.addf %15, %20 : vector<32x64xf32>
    %22 = vector.extract_strided_slice %9 {offsets = [0, 2], sizes = [32, 1], strides = [1, 1]} : vector<32x4xf32> to vector<32x1xf32>
    %23 = vector.extract_strided_slice %8 {offsets = [2, 0], sizes = [1, 64], strides = [1, 1]} : vector<4x64xf32> to vector<1x64xf32>
    %24 = vector.broadcast %22 : vector<32x1xf32> to vector<32x64xf32>
    %25 = vector.broadcast %23 : vector<1x64xf32> to vector<32x64xf32>
    %26 = arith.mulf %24, %25 : vector<32x64xf32>
    %27 = arith.addf %21, %26 : vector<32x64xf32>
    %28 = vector.extract_strided_slice %9 {offsets = [0, 3], sizes = [32, 1], strides = [1, 1]} : vector<32x4xf32> to vector<32x1xf32>
    %29 = vector.extract_strided_slice %8 {offsets = [3, 0], sizes = [1, 64], strides = [1, 1]} : vector<4x64xf32> to vector<1x64xf32>
    %30 = vector.broadcast %28 : vector<32x1xf32> to vector<32x64xf32>
    %31 = vector.broadcast %29 : vector<1x64xf32> to vector<32x64xf32>
    %32 = arith.mulf %30, %31 : vector<32x64xf32>
    %33 = arith.addf %27, %32 : vector<32x64xf32>
    %cst = arith.constant 0.000000e+00 : f32
    %34 = vector.broadcast %cst : f32 to vector<32x64xf32>
    %35 = arith.maximumf %33, %34 : vector<32x64xf32>
    %c0_9 = arith.constant 0 : index
    %c0_10 = arith.constant 0 : index
    %36 = vector.load %arg6[%c0_9, %c0_10] : memref<32x32xf32, #tpu.memory_space<vmem>>, vector<32x32xf32>
    %cst_11 = arith.constant dense<0.000000e+00> : vector<32x64xf32>
    %37 = tpu.matmul %36, %35, %cst_11 {dimension_numbers = #tpu.dot_dimension_numbers<[1], [0], [0], [1], [0, 0, 1, 1], [], []>} : vector<32x32xf32>, vector<32x64xf32>, vector<32x64xf32> -> vector<32x64xf32>
    %c0_12 = arith.constant 0 : index
    %c0_13 = arith.constant 0 : index
    %38 = vector.load %arg7[%c0_12, %c0_13] : memref<32x1xf32, #tpu.memory_space<vmem>>, vector<32x1xf32>
    %39 = vector.broadcast %38 : vector<32x1xf32> to vector<32x64xf32>
    %40 = arith.addf %37, %39 : vector<32x64xf32>
    %cst_14 = arith.constant 0.000000e+00 : f32
    %41 = vector.broadcast %cst_14 : f32 to vector<32x64xf32>
    %42 = arith.maximumf %40, %41 : vector<32x64xf32>
    %c0_15 = arith.constant 0 : index
    %c0_16 = arith.constant 0 : index
    %43 = vector.load %arg8[%c0_15, %c0_16] : memref<4x32xf32, #tpu.memory_space<vmem>>, vector<4x32xf32>
    %cst_17 = arith.constant dense<0.000000e+00> : vector<4x64xf32>
    %44 = tpu.matmul %43, %42, %cst_17 {dimension_numbers = #tpu.dot_dimension_numbers<[1], [0], [0], [1], [0, 0, 1, 1], [], []>} : vector<4x32xf32>, vector<32x64xf32>, vector<4x64xf32> -> vector<4x64xf32>
    %c0_18 = arith.constant 0 : index
    %c0_19 = arith.constant 0 : index
    %45 = vector.load %arg9[%c0_18, %c0_19] : memref<4x1xf32, #tpu.memory_space<vmem>>, vector<4x1xf32>
    %46 = vector.broadcast %45 : vector<4x1xf32> to vector<4x64xf32>
    %47 = arith.addf %44, %46 : vector<4x64xf32>
    %c0_20 = arith.constant 0 : index
    %c0_21 = arith.constant 0 : index
    %48 = vector.load %arg10[%c0_20, %c0_21] : memref<4x64xf32, #tpu.memory_space<vmem>>, vector<4x64xf32>
    tpu.vector_store %arg10[%c0_20, %c0_21], %47 {strides = array<i32>} : memref<4x64xf32, #tpu.memory_space<vmem>>, vector<4x64xf32>,
    return
  }
  func.func @transform_0(%arg0: i32) -> (i32, i32) {
    %c0_i32 = arith.constant 0 : i32
    %c0_i32_0 = arith.constant 0 : i32
    return %c0_i32, %arg0 : i32, i32
  }
  func.func @transform_1(%arg0: i32) -> (i32, i32) {
    %c0_i32 = arith.constant 0 : i32
    %c0_i32_0 = arith.constant 0 : i32
    return %c0_i32, %arg0 : i32, i32
  }
  func.func @transform_2(%arg0: i32) -> (i32, i32) {
    %c0_i32 = arith.constant 0 : i32
    %c0_i32_0 = arith.constant 0 : i32
    %c0_i32_1 = arith.constant 0 : i32
    return %c0_i32, %c0_i32_0 : i32, i32
  }
  func.func @transform_3(%arg0: i32) -> (i32, i32) {
    %c0_i32 = arith.constant 0 : i32
    %c0_i32_0 = arith.constant 0 : i32
    %c0_i32_1 = arith.constant 0 : i32
    return %c0_i32, %c0_i32_0 : i32, i32
  }
  func.func @transform_4(%arg0: i32) -> (i32, i32) {
    %c0_i32 = arith.constant 0 : i32
    %c0_i32_0 = arith.constant 0 : i32
    %c0_i32_1 = arith.constant 0 : i32
    return %c0_i32, %c0_i32_0 : i32, i32
  }
  func.func @transform_5(%arg0: i32) -> (i32, i32) {
    %c0_i32 = arith.constant 0 : i32
    %c0_i32_0 = arith.constant 0 : i32
    %c0_i32_1 = arith.constant 0 : i32
    return %c0_i32, %c0_i32_0 : i32, i32
  }
  func.func @transform_6(%arg0: i32) -> (i32, i32) {
    %c0_i32 = arith.constant 0 : i32
    %c0_i32_0 = arith.constant 0 : i32
    %c0_i32_1 = arith.constant 0 : i32
    return %c0_i32, %c0_i32_0 : i32, i32
  }
  func.func @transform_7(%arg0: i32) -> (i32, i32) {
    %c0_i32 = arith.constant 0 : i32
    %c0_i32_0 = arith.constant 0 : i32
    %c0_i32_1 = arith.constant 0 : i32
    return %c0_i32, %c0_i32_0 : i32, i32
  }
  func.func @transform_8(%arg0: i32) -> (i32, i32) {
    %c0_i32 = arith.constant 0 : i32
    %c0_i32_0 = arith.constant 0 : i32
    %c0_i32_1 = arith.constant 0 : i32
    return %c0_i32, %c0_i32_0 : i32, i32
  }
  func.func @transform_9(%arg0: i32) -> (i32, i32) {
    %c0_i32 = arith.constant 0 : i32
    %c0_i32_0 = arith.constant 0 : i32
    return %c0_i32, %arg0 : i32, i32
  }
}

</mosaic_0001>

<llo_original>
// kernel: tpu_custom_call.1
$region0: #{tpu_custom_call.1}
  #allocation0 [shape = 'u32[]', space=smem, size = 0x4, offset = 0x4, fixed_abs, tag = 'smem constant byte address 0x4 - core index']
  #allocation1 [shape = 'u32[144,128]{1,0:T(1,128)}', space=vmem, size = 0x12000, scoped, tag = 'internal scratch']
  %s0 = inlined_call_operand.vmem [shape: f32[4,64], index: 0, kind: input, shape index: {}]
  %s1 = inlined_call_operand.vmem [shape: f32[1,64], index: 1, kind: input, shape index: {}]
  %s2 = inlined_call_operand.vmem [shape: f32[32,4], index: 2, kind: input, shape index: {}]
  %s3 = inlined_call_operand.vmem [shape: f32[32,1], index: 3, kind: input, shape index: {}]
  %s4 = inlined_call_operand.vmem [shape: f32[32,1], index: 4, kind: input, shape index: {}]
  %s5 = inlined_call_operand.vmem [shape: f32[32,32], index: 5, kind: input, shape index: {}]
  %s6 = inlined_call_operand.vmem [shape: f32[32,1], index: 6, kind: input, shape index: {}]
  %s7 = inlined_call_operand.vmem [shape: f32[4,32], index: 7, kind: input, shape index: {}]
  %s8 = inlined_call_operand.vmem [shape: f32[4,1], index: 8, kind: input, shape index: {}]
  %s9 = inlined_call_operand.hbm [shape: f32[4,64], index: 9, kind: output, shape index: {}]
  %s10 = sld [smem:[#allocation0]]
  $region46: #{tpu_custom_call.1} parent=0
    _
  %s12 = ssub.s32 1, %s10
  %s13 = scalar_select 0, %s12, %s10
  $region1: #{tpu_custom_call.1} parent=0
    #allocation2 [shape = 'u8[2048]{0}', space=vmem, size = 0x800, scoped, tag = 'output window, operand 0, single buffered']
    #allocation3 [shape = 's32[1]{0}', space=sflag, size = 0x4, scoped, tag = 'scoped memory for tpu_custom_call.1']
    %14 = vsyncpa [#allocation3], 0
    // Predicated region
    $region2: #{tpu_custom_call.1} parent=1 // pred_check
      _
    $region3: #{tpu_custom_call.1} parent=1 // pred_check_branch
      %16 = sbr.rel (0) target = $region5
    $region4: #{tpu_custom_call.1} parent=1 // pred_region
      _
    $region5: #{tpu_custom_call.1} parent=1 // pred_fallthru
      _
    // Predicated region
    $region6: #{tpu_custom_call.1} parent=1 // pred_check
      _
    $region7: #{tpu_custom_call.1} parent=1 // pred_check_branch
      %18 = sbr.rel (0) target = $region9
    $region8: #{tpu_custom_call.1} parent=1 // pred_region
      _
    $region9: #{tpu_custom_call.1} parent=1 // pred_fallthru
      _
    // Predicated region
    $region10: #{tpu_custom_call.1} parent=1 // pred_check
      _
    $region11: #{tpu_custom_call.1} parent=1 // pred_check_branch
      %20 = sbr.rel (0) target = $region13
    $region12: #{tpu_custom_call.1} parent=1 // pred_region
      _
    $region13: #{tpu_custom_call.1} parent=1 // pred_fallthru
      _
    // Predicated region
    $region14: #{tpu_custom_call.1} parent=1 // pred_check
      _
    $region15: #{tpu_custom_call.1} parent=1 // pred_check_branch
      %22 = sbr.rel (0) target = $region17
    $region16: #{tpu_custom_call.1} parent=1 // pred_region
      _
    $region17: #{tpu_custom_call.1} parent=1 // pred_fallthru
      _
    // Predicated region
    $region18: #{tpu_custom_call.1} parent=1 // pred_check
      _
    $region19: #{tpu_custom_call.1} parent=1 // pred_check_branch
      %24 = sbr.rel (0) target = $region21
    $region20: #{tpu_custom_call.1} parent=1 // pred_region
      _
    $region21: #{tpu_custom_call.1} parent=1 // pred_fallthru
      _
    // Predicated region
    $region22: #{tpu_custom_call.1} parent=1 // pred_check
      _
    $region23: #{tpu_custom_call.1} parent=1 // pred_check_branch
      %26 = sbr.rel (0) target = $region25
    $region24: #{tpu_custom_call.1} parent=1 // pred_region
      _
    $region25: #{tpu_custom_call.1} parent=1 // pred_fallthru
      _
    // Predicated region
    $region26: #{tpu_custom_call.1} parent=1 // pred_check
      _
    $region27: #{tpu_custom_call.1} parent=1 // pred_check_branch
      %28 = sbr.rel (0) target = $region29
    $region28: #{tpu_custom_call.1} parent=1 // pred_region
      _
    $region29: #{tpu_custom_call.1} parent=1 // pred_fallthru
      _
    // Predicated region
    $region30: #{tpu_custom_call.1} parent=1 // pred_check
      _
    $region31: #{tpu_custom_call.1} parent=1 // pred_check_branch
      %30 = sbr.rel (0) target = $region33
    $region32: #{tpu_custom_call.1} parent=1 // pred_region
      _
    $region33: #{tpu_custom_call.1} parent=1 // pred_fallthru
      _
    // Predicated region
    $region34: #{tpu_custom_call.1} parent=1 // pred_check
      _
    $region35: #{tpu_custom_call.1} parent=1 // pred_check_branch
      %32 = sbr.rel (0) target = $region37
    $region36: #{tpu_custom_call.1} parent=1 // pred_region
      _
    $region37: #{tpu_custom_call.1} parent=1 // pred_fallthru
      _
    %v33 = vld [vmem:[%s1] sm:$0x1]
    %v34 = vld [vmem:[%s3] sm:$0xff]
    %v35 = vld [vmem:[%s3 + $0x8] sm:$0xff]
    %v36 = vld [vmem:[%s3 + $0x10] sm:$0xff]
    %v37 = vld [vmem:[%s3 + $0x18] sm:$0xff]
    %39 = vset.pattern.permute.xlu0 0
    %40 = vperm.xlu0 %39, %v34
    %v41 = vpop.permute.xlu0 %40
    %44 = vset.pattern.permute.xlu0 0
    %45 = vperm.xlu0 %44, %v35
    %v46 = vpop.permute.xlu0 %45
    %49 = vset.pattern.permute.xlu0 0
    %50 = vperm.xlu0 %49, %v36
    %v51 = vpop.permute.xlu0 %50
    %54 = vset.pattern.permute.xlu0 0
    %55 = vperm.xlu0 %54, %v37
    %v56 = vpop.permute.xlu0 %55
    %v59 = vlaneseq
    %v60 = vshrl.u32 %v59, 7
    %v61 = vsub.s32 0, %v60
    %v62 = vrot.slane %v33, %v61
    %v64 = vmul.f32 %v41, %v62
    %v65 = vmul.f32 %v46, %v62
    %v66 = vmul.f32 %v51, %v62
    %v67 = vmul.f32 %v56, %v62
    %v68 = vld [vmem:[%s4] sm:$0xff]
    %v69 = vld [vmem:[%s4 + $0x8] sm:$0xff]
    %v70 = vld [vmem:[%s4 + $0x10] sm:$0xff]
    %v71 = vld [vmem:[%s4 + $0x18] sm:$0xff]
    %73 = vset.pattern.permute.xlu0 0
    %74 = vperm.xlu0 %73, %v68
    %v75 = vpop.permute.xlu0 %74
    %78 = vset.pattern.permute.xlu0 0
    %79 = vperm.xlu0 %78, %v69
    %v80 = vpop.permute.xlu0 %79
    %83 = vset.pattern.permute.xlu0 0
    %84 = vperm.xlu0 %83, %v70
    %v85 = vpop.permute.xlu0 %84
    %88 = vset.pattern.permute.xlu0 0
    %89 = vperm.xlu0 %88, %v71
    %v90 = vpop.permute.xlu0 %89
    %v92 = vadd.f32 %v64, %v75
    %v93 = vadd.f32 %v65, %v80
    %v94 = vadd.f32 %v66, %v85
    %v95 = vadd.f32 %v67, %v90
    %v96 = vld [vmem:[%s0] sm:$0xf]
    %v97 = vld [vmem:[%s2] sm:$0xff]
    %v98 = vld [vmem:[%s2 + $0x8] sm:$0xff]
    %v99 = vld [vmem:[%s2 + $0x10] sm:$0xff]
    %v100 = vld [vmem:[%s2 + $0x18] sm:$0xff]
    %102 = vset.pattern.permute.xlu0 0
    %103 = vperm.xlu0 %102, %v97
    %v104 = vpop.permute.xlu0 %103
    %107 = vset.pattern.permute.xlu0 0
    %108 = vperm.xlu0 %107, %v98
    %v109 = vpop.permute.xlu0 %108
    %112 = vset.pattern.permute.xlu0 0
    %113 = vperm.xlu0 %112, %v99
    %v114 = vpop.permute.xlu0 %113
    %117 = vset.pattern.permute.xlu0 0
    %118 = vperm.xlu0 %117, %v100
    %v119 = vpop.permute.xlu0 %118
    %v121 = vlaneseq
    %v122 = vshrl.u32 %v121, 7
    %v123 = vsub.s32 0, %v122
    %v124 = vrot.slane %v96, %v123
    %v125 = vmul.f32 %v104, %v124
    %v126 = vmul.f32 %v109, %v124
    %v127 = vmul.f32 %v114, %v124
    %v128 = vmul.f32 %v119, %v124
    %v129 = vadd.f32 %v92, %v125
    %v130 = vadd.f32 %v93, %v126
    %v131 = vadd.f32 %v94, %v127
    %v132 = vadd.f32 %v95, %v128
    %133 = vset.pattern.permute.xlu0 1
    %134 = vperm.xlu0 %133, %v97
    %v135 = vpop.permute.xlu0 %134
    %137 = vset.pattern.permute.xlu0 1
    %138 = vperm.xlu0 %137, %v98
    %v139 = vpop.permute.xlu0 %138
    %141 = vset.pattern.permute.xlu0 1
    %142 = vperm.xlu0 %141, %v99
    %v143 = vpop.permute.xlu0 %142
    %145 = vset.pattern.permute.xlu0 1
    %146 = vperm.xlu0 %145, %v100
    %v147 = vpop.permute.xlu0 %146
    %v149 = vlaneseq
    %v150 = vshrl.u32 %v149, 7
    %v151 = vsub.s32 1, %v150
    %v152 = vrot.slane %v96, %v151
    %v153 = vmul.f32 %v135, %v152
    %v154 = vmul.f32 %v139, %v152
    %v155 = vmul.f32 %v143, %v152
    %v156 = vmul.f32 %v147, %v152
    %v157 = vadd.f32 %v129, %v153
    %v158 = vadd.f32 %v130, %v154
    %v159 = vadd.f32 %v131, %v155
    %v160 = vadd.f32 %v132, %v156
    %161 = vset.pattern.permute.xlu0 2
    %162 = vperm.xlu0 %161, %v97
    %v163 = vpop.permute.xlu0 %162
    %165 = vset.pattern.permute.xlu0 2
    %166 = vperm.xlu0 %165, %v98
    %v167 = vpop.permute.xlu0 %166
    %169 = vset.pattern.permute.xlu0 2
    %170 = vperm.xlu0 %169, %v99
    %v171 = vpop.permute.xlu0 %170
    %173 = vset.pattern.permute.xlu0 2
    %174 = vperm.xlu0 %173, %v100
    %v175 = vpop.permute.xlu0 %174
    %v177 = vlaneseq
    %v178 = vshrl.u32 %v177, 7
    %v179 = vsub.s32 2, %v178
    %v180 = vrot.slane %v96, %v179
    %v181 = vmul.f32 %v163, %v180
    %v182 = vmul.f32 %v167, %v180
    %v183 = vmul.f32 %v171, %v180
    %v184 = vmul.f32 %v175, %v180
    %v185 = vadd.f32 %v157, %v181
    %v186 = vadd.f32 %v158, %v182
    %v187 = vadd.f32 %v159, %v183
    %v188 = vadd.f32 %v160, %v184
    %189 = vset.pattern.permute.xlu0 3
    %190 = vperm.xlu0 %189, %v97
    %v191 = vpop.permute.xlu0 %190
    %193 = vset.pattern.permute.xlu0 3
    %194 = vperm.xlu0 %193, %v98
    %v195 = vpop.permute.xlu0 %194
    %197 = vset.pattern.permute.xlu0 3
    %198 = vperm.xlu0 %197, %v99
    %v199 = vpop.permute.xlu0 %198
    %201 = vset.pattern.permute.xlu0 3
    %202 = vperm.xlu0 %201, %v100
    %v203 = vpop.permute.xlu0 %202
    %v205 = vlaneseq
    %v206 = vshrl.u32 %v205, 7
    %v207 = vsub.s32 3, %v206
    %v208 = vrot.slane %v96, %v207
    %v209 = vmul.f32 %v191, %v208
    %v210 = vmul.f32 %v195, %v208
    %v211 = vmul.f32 %v199, %v208
    %v212 = vmul.f32 %v203, %v208
    %v213 = vadd.f32 %v185, %v209
    %v214 = vadd.f32 %v186, %v210
    %v215 = vadd.f32 %v187, %v211
    %v216 = vadd.f32 %v188, %v212
    %v217 = vmax.f32 %v213, 0.0
    %v218 = vmax.f32 %v214, 0.0
    %v219 = vmax.f32 %v215, 0.0
    %v220 = vmax.f32 %v216, 0.0
    %v221 = vld [vmem:[%s5] sm:$0xff]
    %v222 = vld [vmem:[%s5 + $0x8] sm:$0xff]
    %v223 = vld [vmem:[%s5 + $0x10] sm:$0xff]
    %v224 = vld [vmem:[%s5 + $0x18] sm:$0xff]
    %v225 = vld [vmem:[%s6] sm:$0xff]
    %v226 = vld [vmem:[%s6 + $0x8] sm:$0xff]
    %v227 = vld [vmem:[%s6 + $0x10] sm:$0xff]
    %v228 = vld [vmem:[%s6 + $0x18] sm:$0xff]
    %230 = vset.pattern.permute.xlu0 0
    %231 = vperm.xlu0 %230, %v225
    %v232 = vpop.permute.xlu0 %231
    %235 = vset.pattern.permute.xlu0 0
    %236 = vperm.xlu0 %235, %v226
    %v237 = vpop.permute.xlu0 %236
    %240 = vset.pattern.permute.xlu0 0
    %241 = vperm.xlu0 %240, %v227
    %v242 = vpop.permute.xlu0 %241
    %245 = vset.pattern.permute.xlu0 0
    %246 = vperm.xlu0 %245, %v228
    %v247 = vpop.permute.xlu0 %246
    %vm249 = vcmask 261120
    %v251 = vsel %vm249, %v221, 0
    %v254 = vsel %vm249, %v222, 0
    %v257 = vsel %vm249, %v223, 0
    %v260 = vsel %vm249, %v224, 0
    %262 = vmatprep.subr.mxu0 0.0
    %263 = vmatpush1.msra.mxu0 %v217
    %264 = vmatprep.subr.mxu0 0.0
    %265 = vmatpush1.msra.mxu0 %v218
    %266 = vmatprep.subr.mxu0 0.0
    %267 = vmatpush1.msra.mxu0 %v219
    %268 = vmatprep.subr.mxu0 0.0
    %269 = vmatpush1.msra.mxu0 %v220
    %270 = vmatprep.subr.mxu0 0.0
    %271 = vmatpush1.msra.mxu0 0.0
    %272 = vmatprep.subr.mxu0 0.0
    %273 = vmatpush1.msra.mxu0 0.0
    %274 = vmatprep.subr.mxu0 0.0
    %275 = vmatpush1.msra.mxu0 0.0
    %276 = vmatprep.subr.mxu0 0.0
    %277 = vmatpush1.msra.mxu0 0.0
    %278 = vmatprep.subr.mxu0 0.0
    %279 = vmatpush1.msra.mxu0 0.0
    %280 = vmatprep.subr.mxu0 0.0
    %281 = vmatpush1.msra.mxu0 0.0
    %282 = vmatprep.subr.mxu0 0.0
    %283 = vmatpush1.msra.mxu0 0.0
    %284 = vmatprep.subr.mxu0 0.0
    %285 = vmatpush1.msra.mxu0 0.0
    %286 = vmatprep.subr.mxu0 0.0
    %287 = vmatpush1.msra.mxu0 0.0
    %288 = vmatprep.subr.mxu0 0.0
    %289 = vmatpush1.msra.mxu0 0.0
    %290 = vmatprep.subr.mxu0 0.0
    %291 = vmatpush1.msra.mxu0 0.0
    %292 = vmatprep.subr.mxu0 0.0
    %293 = vmatpush1.msra.mxu0 0.0
    %294 = vmatprep.subr.mxu0 0.0
    %295 = vmatpush1.msra.mxu0 0.0
    %296 = vmatprep.subr.mxu0 0.0
    %297 = vmatpush1.msra.mxu0 0.0
    %298 = vmatprep.subr.mxu0 0.0
    %299 = vmatpush1.msra.mxu0 0.0
    %300 = vmatprep.subr.mxu0 0.0
    %301 = vmatpush1.msra.mxu0 0.0
    %302 = vmatprep.subr.mxu0 0.0
    %303 = vmatpush1.msra.mxu0 0.0
    %304 = vmatprep.subr.mxu0 0.0
    %305 = vmatpush1.msra.mxu0 0.0
    %306 = vmatprep.subr.mxu0 0.0
    %307 = vmatpush1.msra.mxu0 0.0
    %308 = vmatprep.subr.mxu0 0.0
    %309 = vmatpush1.msra.mxu0 0.0
    %310 = vmatprep.subr.mxu0 0.0
    %311 = vmatpush1.msra.mxu0 0.0
    %312 = vmatprep.subr.mxu0 0.0
    %313 = vmatpush1.msra.mxu0 0.0
    %314 = vmatprep.subr.mxu0 0.0
    %315 = vmatpush1.msra.mxu0 0.0
    %316 = vmatprep.subr.mxu0 0.0
    %317 = vmatpush1.msra.mxu0 0.0
    %318 = vmatprep.subr.mxu0 0.0
    %319 = vmatpush1.msra.mxu0 0.0
    %320 = vmatprep.subr.mxu0 0.0
    %321 = vmatpush1.msra.mxu0 0.0
    %322 = vmatprep.subr.mxu0 0.0
    %323 = vmatpush1.msra.mxu0 0.0
    %324 = vmatprep.subr.mxu0 0.0
    %325 = vmatpush1.msra.mxu0 0.0
    %326 = vmatprep.mubr.f32.mxu0 0.0
    %327 = vmatmul.mubr.f32.gmra.mrb[0].mxu0 %v251
    %v328 = vpop.f32.mrb[0].mxu0
    %v329 = vadd.f32 %v232, %v328
    %v330 = vpop.f32.mrb[0].mxu0
    %331 = vmatprep.mubr.f32.mxu0 0.0
    %332 = vmatmul.mubr.f32.gmra.mrb[0].mxu0 %v254
    %v333 = vpop.f32.mrb[0].mxu0
    %v334 = vadd.f32 %v237, %v333
    %v335 = vpop.f32.mrb[0].mxu0
    %336 = vmatprep.mubr.f32.mxu0 0.0
    %337 = vmatmul.mubr.f32.gmra.mrb[0].mxu0 %v257
    %v338 = vpop.f32.mrb[0].mxu0
    %v339 = vadd.f32 %v242, %v338
    %v340 = vpop.f32.mrb[0].mxu0
    %341 = vmatprep.mubr.f32.mxu0 0.0
    %342 = vmatmul.mubr.f32.gmra.mrb[0].mxu0 %v260
    %v343 = vpop.f32.mrb[0].mxu0
    %v344 = vadd.f32 %v247, %v343
    %v345 = vpop.f32.mrb[0].mxu0
    %346 = vdwg.mxu0
    %v347 = vmax.f32 %v329, 0.0
    %v348 = vmax.f32 %v334, 0.0
    %v349 = vmax.f32 %v339, 0.0
    %v350 = vmax.f32 %v344, 0.0
    %v351 = vld [vmem:[%s7] sm:$0xf]
    %v352 = vld [vmem:[%s8] sm:$0xf]
    %354 = vset.pattern.permute.xlu0 0
    %355 = vperm.xlu0 %354, %v352
    %v356 = vpop.permute.xlu0 %355
    %v359 = vsel %vm249, %v351, 0
    %361 = vmatprep.subr.mxu0 0.0
    %362 = vmatpush1.msra.mxu0 %v347
    %363 = vmatprep.subr.mxu0 0.0
    %364 = vmatpush1.msra.mxu0 %v348
    %365 = vmatprep.subr.mxu0 0.0
    %366 = vmatpush1.msra.mxu0 %v349
    %367 = vmatprep.subr.mxu0 0.0
    %368 = vmatpush1.msra.mxu0 %v350
    %369 = vmatprep.subr.mxu0 0.0
    %370 = vmatpush1.msra.mxu0 0.0
    %371 = vmatprep.subr.mxu0 0.0
    %372 = vmatpush1.msra.mxu0 0.0
    %373 = vmatprep.subr.mxu0 0.0
    %374 = vmatpush1.msra.mxu0 0.0
    %375 = vmatprep.subr.mxu0 0.0
    %376 = vmatpush1.msra.mxu0 0.0
    %377 = vmatprep.subr.mxu0 0.0
    %378 = vmatpush1.msra.mxu0 0.0
    %379 = vmatprep.subr.mxu0 0.0
    %380 = vmatpush1.msra.mxu0 0.0
    %381 = vmatprep.subr.mxu0 0.0
    %382 = vmatpush1.msra.mxu0 0.0
    %383 = vmatprep.subr.mxu0 0.0
    %384 = vmatpush1.msra.mxu0 0.0
    %385 = vmatprep.subr.mxu0 0.0
    %386 = vmatpush1.msra.mxu0 0.0
    %387 = vmatprep.subr.mxu0 0.0
    %388 = vmatpush1.msra.mxu0 0.0
    %389 = vmatprep.subr.mxu0 0.0
    %390 = vmatpush1.msra.mxu0 0.0
    %391 = vmatprep.subr.mxu0 0.0
    %392 = vmatpush1.msra.mxu0 0.0
    %393 = vmatprep.subr.mxu0 0.0
    %394 = vmatpush1.msra.mxu0 0.0
    %395 = vmatprep.subr.mxu0 0.0
    %396 = vmatpush1.msra.mxu0 0.0
    %397 = vmatprep.subr.mxu0 0.0
    %398 = vmatpush1.msra.mxu0 0.0
    %399 = vmatprep.subr.mxu0 0.0
    %400 = vmatpush1.msra.mxu0 0.0
    %401 = vmatprep.subr.mxu0 0.0
    %402 = vmatpush1.msra.mxu0 0.0
    %403 = vmatprep.subr.mxu0 0.0
    %404 = vmatpush1.msra.mxu0 0.0
    %405 = vmatprep.subr.mxu0 0.0
    %406 = vmatpush1.msra.mxu0 0.0
    %407 = vmatprep.subr.mxu0 0.0
    %408 = vmatpush1.msra.mxu0 0.0
    %409 = vmatprep.subr.mxu0 0.0
    %410 = vmatpush1.msra.mxu0 0.0
    %411 = vmatprep.subr.mxu0 0.0
    %412 = vmatpush1.msra.mxu0 0.0
    %413 = vmatprep.subr.mxu0 0.0
    %414 = vmatpush1.msra.mxu0 0.0
    %415 = vmatprep.subr.mxu0 0.0
    %416 = vmatpush1.msra.mxu0 0.0
    %417 = vmatprep.subr.mxu0 0.0
    %418 = vmatpush1.msra.mxu0 0.0
    %419 = vmatprep.subr.mxu0 0.0
    %420 = vmatpush1.msra.mxu0 0.0
    %421 = vmatprep.subr.mxu0 0.0
    %422 = vmatpush1.msra.mxu0 0.0
    %423 = vmatprep.subr.mxu0 0.0
    %424 = vmatpush1.msra.mxu0 0.0
    %425 = vmatprep.mubr.f32.mxu0 0.0
    %426 = vmatmul.mubr.f32.gmra.mrb[0].mxu0 %v359
    %v427 = vpop.f32.mrb[0].mxu0
    %v428 = vadd.f32 %v356, %v427
    %v429 = vpop.f32.mrb[0].mxu0
    %430 = vdwg.mxu0
    %vm431 = vcmask 519168
    %432 = vst.msk [vmem:[#allocation2] sm:$0xf] %vm431, %v428
    // Predicated region
    $region38: #{tpu_custom_call.1} parent=1 // pred_check
      _
    $region39: #{tpu_custom_call.1} parent=1 // pred_check_branch
      %434 = sbr.rel (0) target = $region41
    $region40: #{tpu_custom_call.1} parent=1 // pred_region
      %s436 = ssub.s32 64, 64
      %437 = vsyncadd [#allocation3], %s436
      %s439 = sshll.u32 [#allocation2], 4
      %s440 = int_to_ptr.vmem [resolvable:$true] %s439
      %442 = dma.vmem_to_hbm [thread:$0]  %s440, 64, %s9, [#allocation3]
    $region41: #{tpu_custom_call.1} parent=1 // pred_fallthru
      _
    // Predicated region
    $region42: #{tpu_custom_call.1} parent=1 // pred_check
      _
    $region43: #{tpu_custom_call.1} parent=1 // pred_check_branch
      %444 = sbr.rel (0) target = $region45
    $region44: #{tpu_custom_call.1} parent=1 // pred_region
      %445 = dma.done [#allocation3], 64
    $region45: #{tpu_custom_call.1} parent=1 // pred_fallthru
      _
    %446 = vsyncpa [#allocation3], 1

</llo_original>
